<compile_context>
chip_gen: v7x
topology: tpu7x:2x2x1
jax: 0.10.0
libtpu: 0.0.40
codegen_flags: <defaults>
</compile_context>

<pallas_src>
import jax
import jax.numpy as jnp
from jax.experimental import pallas as pl
from jax.experimental.pallas import tpu as pltpu


def _round_up(v, m):
    return -(-v // m) * m


def _choose_tile_t(T, B, D, itemsize):
    """Row-tile over the text-token axis.

    Must be a multiple of 8 or equal to T (full dim). Cap so the double-buffered
    text block stays under ~8 MiB of VMEM; keep >= 2 parallel grid steps when
    there is enough work (v7x megacore)."""
    vmem_rows = max(8, (4 * 1024 * 1024) // max(1, D * itemsize))
    cap = max(8, min(1024, (vmem_rows // 8) * 8))
    if T <= 8:
        return T                               # block == full dim: always legal
    if T <= cap:
        if B == 1 and T >= 16:
            # Split the row axis so both v7x TensorCores get work.
            return min(cap, _round_up(pl.cdiv(T, 2), 8))
        return T                               # block == full dim
    return cap                                 # 8-multiple; ragged last block is masked


def _router_kernel(txt_ref, img_ref, w_ref, o_ref):
    # txt_ref: (tile_t, D)   text rows, native dtype (cast here, hidden under DMA)
    # img_ref: (1, out_dim)  f32 precomputed per-batch image term (free VPU broadcast)
    # w_ref:   (D, out_dim)  text half of the weight, already in the MXU operand dtype
    # o_ref:   (tile_t, out_dim) output tile
    txt = txt_ref[...].astype(w_ref.dtype)
    acc = jnp.dot(txt, w_ref[...], preferred_element_type=jnp.float32)
    o_ref[...] = (acc + img_ref[...]).astype(o_ref.dtype)


def skip_router_forward(x, question_mask, w, *, matmul_dtype=None):
    """x: (B, S, D); question_mask: (B, Q) (only its static shape is used, like the
    PyTorch module); w: (out_features, 2*D) linear weight (no bias).
    Returns (B, Q-1, out_features) in x.dtype.

    matmul_dtype: optional lower-precision dtype (e.g. jnp.bfloat16) for the MXU
    operands on v6e/v7x; accumulation stays float32.
    """
    B, S, D = x.shape
    Q = question_mask.shape[1]
    T = Q - 1
    out_features, two_d = w.shape
    assert two_d == 2 * D, "weight in_features must equal 2*D"
    assert 2 <= Q <= S, "need at least one text token and Q <= S"

    mm_dtype = x.dtype if matmul_dtype is None else matmul_dtype

    # Lane-dense output only when out_features is large and misaligned; tiny
    # out_features are written exactly (masked vst beats 64x padded HBM bytes).
    if out_features >= 128 and out_features % 128 != 0:
        out_dim = _round_up(out_features, 128)
    else:
        out_dim = out_features

    # Weight halves, transposed once (image half -> W[:, :D], text half -> W[:, D:];
    # matches nn.Linear's weight layout for the concatenated input).
    w_img_t = w[:, :D].T.astype(mm_dtype)              # (D, out_features)
    w_txt_t = w[:, D:].T.astype(mm_dtype)              # (D, out_features)
    if out_dim > out_features:
        pad = ((0, 0), (0, out_dim - out_features))
        w_img_t = jnp.pad(w_img_t, pad)
        w_txt_t = jnp.pad(w_txt_t, pad)

    # Per-batch image term: tiny (B, D) x (D, out_dim) matmul -- plain XLA,
    # no extra kernel launch; f32 accumulate.
    img_proj = jnp.dot(x[:, 0, :].astype(mm_dtype), w_img_t,
                       preferred_element_type=jnp.float32)          # (B, out_dim) f32
    img_proj = img_proj.reshape(B, 1, out_dim)

    txt = x[:, 1:Q, :]                                  # (B, T, D), native dtype

    tile_t = _choose_tile_t(T, B, D, x.dtype.itemsize)
    num_t = pl.cdiv(T, tile_t)

    out = pl.pallas_call(
        _router_kernel,
        out_shape=jax.ShapeDtypeStruct((B, T, out_dim), x.dtype),
        grid_spec=pltpu.PrefetchScalarGridSpec(
            num_scalar_prefetch=0,
            grid=(B, num_t),
            in_specs=[
                # text rows: batch dim squeezed, ragged last t-block masked by Pallas
                pl.BlockSpec((None, tile_t, D), lambda b, j: (b, j, 0)),
                # per-batch image term: resident across the inner t loop
                pl.BlockSpec((None, 1, out_dim), lambda b, j: (b, 0, 0)),
                # text half of the weight: constant block, fetched once
                pl.BlockSpec((D, out_dim), lambda b, j: (0, 0)),
            ],
            out_specs=pl.BlockSpec((None, tile_t, out_dim), lambda b, j: (b, j, 0)),
        ),
        compiler_params=pltpu.CompilerParams(
            dimension_semantics=("parallel", "parallel"),
            # Double-buffered working set is a few MiB even at tile_t=1024, D=768.
            vmem_limit_bytes=32 * 1024 * 1024,
        ),
    )(txt, img_proj, w_txt_t)

    if out_dim > out_features:
        out = out[..., :out_features]
    return out


def skip_router_ref(x, question_mask, w):
    Q = question_mask.shape[1]
    img = x[:, 0:1, :]
    txt = x[:, 1:Q, :]
    cat = jnp.concatenate(
        [jnp.broadcast_to(img, (x.shape[0], Q - 1, x.shape[2])), txt], axis=-1)
    return jnp.einsum("btd,od->bto", cat, w)


if __name__ == "__main__":
    key = jax.random.PRNGKey(0)
    kx, km, kw, kx2, km2 = jax.random.split(key, 5)

    # --- Test 1: small shapes consistent with the module's forward (full-block path).
    B, S, D = 2, 16, 32          # batch, seq, hidden (in_features = 32)
    Q = 8                        # question_mask.shape[1]
    out_features = 2

    x = jax.random.normal(kx, (B, S, D), dtype=jnp.float32)
    question_mask = (jax.random.uniform(km, (B, Q)) > 0.5).astype(jnp.float32)
    bound = 1.0 / jnp.sqrt(2.0 * D)
    w = jax.random.uniform(kw, (out_features, 2 * D), dtype=jnp.float32,
                           minval=-bound, maxval=bound)

    ref = skip_router_ref(x, question_mask, w)
    out = jax.block_until_ready(skip_router_forward(x, question_mask, w))
    assert out.shape == (B, Q - 1, out_features)
    assert jnp.allclose(out, ref, atol=1e-5, rtol=1e-5)

    # --- Test 2: bf16 MXU-operand path (v6e/v7x), f32 accumulate; looser tolerance.
    out_bf16 = jax.block_until_ready(
        skip_router_forward(x, question_mask, w, matmul_dtype=jnp.bfloat16))
    assert out_bf16.shape == (B, Q - 1, out_features)
    assert jnp.allclose(out_bf16, ref, atol=3e-2, rtol=3e-2)

    # --- Test 3: B=1 split + ragged last row-block (tile_t=16 over T=20, masked edge).
    B2, S2, Q2 = 1, 32, 21
    x2 = jax.random.normal(kx2, (B2, S2, D), dtype=jnp.float32)
    qm2 = (jax.random.uniform(km2, (B2, Q2)) > 0.5).astype(jnp.float32)
    ref2 = skip_router_ref(x2, qm2, w)
    out2 = jax.block_until_ready(skip_router_forward(x2, qm2, w))
    assert out2.shape == (B2, Q2 - 1, out_features)
    assert jnp.allclose(out2, ref2, atol=1e-5, rtol=1e-5)

    print("KERNEL_OK")
</pallas_src>

<mosaic_0001>
module attributes {stable_mosaic.version = 11 : i64} {
  func.func @_router_kernel(%arg0: i32, %arg1: i32, %arg2: memref<1x7x32xf32, #tpu.memory_space<vmem>>, %arg3: memref<1x1x2xf32, #tpu.memory_space<vmem>>, %arg4: memref<32x2xf32, #tpu.memory_space<vmem>>, %arg5: memref<1x7x2xf32, #tpu.memory_space<vmem>>) attributes {dimension_semantics = [#tpu.dimension_semantics<parallel>, #tpu.dimension_semantics<parallel>], iteration_bounds = array<i64: 2, 1>, scalar_prefetch = 0 : i64, scratch_operands = 0 : i64, tpu.core_type = #tpu.core_type<tc>, window_params = [{transform_indices = @transform_0, window_bounds = array<i64: 1, 7, 32>}, {transform_indices = @transform_1, window_bounds = array<i64: 1, 1, 2>}, {pipeline_mode = #tpu.pipeline_mode<synchronous>, transform_indices = @transform_2, window_bounds = array<i64: 32, 2>}, {transform_indices = @transform_3, window_bounds = array<i64: 1, 7, 2>}]} {
    %c0 = arith.constant 0 : index
    %c0_0 = arith.constant 0 : index
    %c0_1 = arith.constant 0 : index
    %0 = vector.load %arg2[%c0, %c0_0, %c0_1] : memref<1x7x32xf32, #tpu.memory_space<vmem>>, vector<1x7x32xf32>
    %1 = vector.shape_cast %0 : vector<1x7x32xf32> to vector<7x32xf32>
    %c0_2 = arith.constant 0 : index
    %c0_3 = arith.constant 0 : index
    %2 = vector.load %arg4[%c0_2, %c0_3] : memref<32x2xf32, #tpu.memory_space<vmem>>, vector<32x2xf32>
    %cst = arith.constant dense<0.000000e+00> : vector<7x2xf32>
    %3 = tpu.matmul %1, %2, %cst {dimension_numbers = #tpu.dot_dimension_numbers<[1], [0], [0], [1], [0, 0, 1, 1], [], []>} : vector<7x32xf32>, vector<32x2xf32>, vector<7x2xf32> -> vector<7x2xf32>
    %c0_4 = arith.constant 0 : index
    %c0_5 = arith.constant 0 : index
    %c0_6 = arith.constant 0 : index
    %4 = vector.load %arg3[%c0_4, %c0_5, %c0_6] : memref<1x1x2xf32, #tpu.memory_space<vmem>>, vector<1x1x2xf32>
    %5 = vector.shape_cast %4 : vector<1x1x2xf32> to vector<1x2xf32>
    %6 = vector.broadcast %5 : vector<1x2xf32> to vector<7x2xf32>
    %7 = arith.addf %3, %6 : vector<7x2xf32>
    %c0_7 = arith.constant 0 : index
    %c0_8 = arith.constant 0 : index
    %c0_9 = arith.constant 0 : index
    %8 = vector.load %arg5[%c0_7, %c0_8, %c0_9] : memref<1x7x2xf32, #tpu.memory_space<vmem>>, vector<1x7x2xf32>
    %9 = vector.shape_cast %8 : vector<1x7x2xf32> to vector<7x2xf32>
    %10 = vector.shape_cast %7 : vector<7x2xf32> to vector<1x7x2xf32>
    tpu.vector_store %arg5[%c0_7, %c0_8, %c0_9], %10 {strides = array<i32>} : memref<1x7x2xf32, #tpu.memory_space<vmem>>, vector<1x7x2xf32>,
    return
  }
  func.func @transform_0(%arg0: i32, %arg1: i32) -> (i32, i32, i32) {
    %c0_i32 = arith.constant 0 : i32
    %c0_i32_0 = arith.constant 0 : i32
    return %arg0, %arg1, %c0_i32 : i32, i32, i32
  }
  func.func @transform_1(%arg0: i32, %arg1: i32) -> (i32, i32, i32) {
    %c0_i32 = arith.constant 0 : i32
    %c0_i32_0 = arith.constant 0 : i32
    %c0_i32_1 = arith.constant 0 : i32
    return %arg0, %c0_i32, %c0_i32_0 : i32, i32, i32
  }
  func.func @transform_2(%arg0: i32, %arg1: i32) -> (i32, i32) {
    %c0_i32 = arith.constant 0 : i32
    %c0_i32_0 = arith.constant 0 : i32
    %c0_i32_1 = arith.constant 0 : i32
    return %c0_i32, %c0_i32_0 : i32, i32
  }
  func.func @transform_3(%arg0: i32, %arg1: i32) -> (i32, i32, i32) {
    %c0_i32 = arith.constant 0 : i32
    %c0_i32_0 = arith.constant 0 : i32
    return %arg0, %arg1, %c0_i32 : i32, i32, i32
  }
}

</mosaic_0001>

<llo_original>
// kernel: tpu_custom_call.1
$region0: #{tpu_custom_call.1}
  #allocation0 [shape = 'u32[]', space=smem, size = 0x4, offset = 0x4, fixed_abs, tag = 'smem constant byte address 0x4 - core index']
  #allocation1 [shape = 'u32[144,128]{1,0:T(1,128)}', space=vmem, size = 0x12000, scoped, tag = 'internal scratch']
  %s0 = inlined_call_operand.vmem [shape: f32[2,7,32], index: 0, kind: input, shape index: {}]
  %s1 = inlined_call_operand.vmem [shape: f32[2,1,2], index: 1, kind: input, shape index: {}]
  %s2 = inlined_call_operand.vmem [shape: f32[32,2], index: 2, kind: input, shape index: {}]
  %s3 = inlined_call_operand.vmem [shape: f32[2,7,2], index: 3, kind: output, shape index: {}]
  %s4 = sld [smem:[#allocation0]]
  $region45: #{tpu_custom_call.1} parent=0
    _
  %s6 = ssub.s32 1, %s4
  %s7 = scalar_select 0, %s6, %s4
  loop: start=0, step=1, limit=4
  $region2: #{tpu_custom_call.1} parent=0 // loop_pre_header
    _
  $region3: #{tpu_custom_call.1} parent=0 // loop_header
    %s9 = sphi 0, %s13
    %p10 = scmp.ge.s32.totalorder %s9, 4
    %s16 = sphi 0, %s28
    %s17 = sphi 0, %s24
    %s18 = sphi 0, %s16
    %s19 = sphi 0, %s17
    %s20 = sphi 0, %s18
    %s21 = sphi 0, %s19
    %s33 = sphi 0, %s35
    %s36 = sphi 0, %s33
    %s37 = sphi 0, %s36
    %s53 = sphi 0, %s37
    %s59 = sphi 0, %s61
    %s62 = sphi 0, %s59
    %s63 = sphi 0, %s62
    %s79 = sphi 0, %s63
    %s83 = sphi 0, %s83
    %s85 = sphi 0, %s83
    %s86 = sphi 0, %s85
    %s100 = sphi 0, %s86
    %s108 = sphi 0, %s110
    %s111 = sphi 0, %s108
    %s112 = sphi 0, %s111
    %s128 = sphi 0, %s112
  $region4: #{tpu_custom_call.1} parent=0 // loop_header_branch
    %12 = sbr.rel (%p10) target = $region8
  $region5: #{tpu_custom_call.1} parent=0 // loop_body
    %s14 = ssub.s32 %s9, 1
    %s15 = ssub.s32 %s9, 2
    %s22 = sadd.s32 1, %s17
    %p23 = scmp.ge.s32.totalorder %s22, 1
    %s24 = scalar_select %p23, 0, %s22
    %s25 = sadd.s32 1, %s16
    %s26 = scalar_select %p23, %s25, %s16
    %p27 = scmp.ge.s32.totalorder %s26, 2
    %s28 = scalar_select %p27, 0, %s26
    %s29 = ssub.s32 %s16, %s28
    %s30 = ssub.s32 %s17, %s24
    %s31 = sor.u32 %s29, %s30
    %p32 = scmp.eq.s32.totalorder %s31, 0
    %s34 = sadd.s32 %s33, 1
    %s35 = scalar_select %p32, %s33, %s34
    %p38 = pneg %p32
    %p39 = scmp.eq.s32.totalorder %s9, 1
    %p40 = por %p38, %p39
    %p41 = scmp.ne.s32.totalorder %s33, %s36
    %p42 = scmp.eq.s32.totalorder %s9, 0
    %p43 = por %p41, %p42
    %p44 = scmp.ne.s32.totalorder %s33, %s36
    %p45 = scmp.eq.s32.totalorder %s14, 1
    %p46 = por %p44, %p45
    %p47 = scmp.ne.s32.totalorder %s36, %s37
    %p48 = scmp.eq.s32.totalorder %s14, 0
    %p49 = por %p47, %p48
    %p50 = scmp.ne.s32.totalorder %s36, %s37
    %p51 = scmp.eq.s32.totalorder %s15, 1
    %p52 = por %p50, %p51
    %p54 = scmp.ne.s32.totalorder %s37, %s53
    %p55 = scmp.eq.s32.totalorder %s15, 0
    %p56 = por %p54, %p55
    %s57 = ssub.s32 %s16, %s28
    %p58 = scmp.eq.s32.totalorder %s57, 0
    %s60 = sadd.s32 %s59, 1
    %s61 = scalar_select %p58, %s59, %s60
    %p64 = pneg %p58
    %p65 = scmp.eq.s32.totalorder %s9, 1
    %p66 = por %p64, %p65
    %p67 = scmp.ne.s32.totalorder %s59, %s62
    %p68 = scmp.eq.s32.totalorder %s9, 0
    %p69 = por %p67, %p68
    %p70 = scmp.ne.s32.totalorder %s59, %s62
    %p71 = scmp.eq.s32.totalorder %s14, 1
    %p72 = por %p70, %p71
    %p73 = scmp.ne.s32.totalorder %s62, %s63
    %p74 = scmp.eq.s32.totalorder %s14, 0
    %p75 = por %p73, %p74
    %p76 = scmp.ne.s32.totalorder %s62, %s63
    %p77 = scmp.eq.s32.totalorder %s15, 1
    %p78 = por %p76, %p77
    %p80 = scmp.ne.s32.totalorder %s63, %s79
    %p81 = scmp.eq.s32.totalorder %s15, 0
    %p82 = por %p80, %p81
    %s84 = sadd.s32 %s83, 1
    %p87 = scmp.eq.s32.totalorder %s9, 1
    %p88 = scmp.ne.s32.totalorder %s83, %s85
    %p89 = scmp.eq.s32.totalorder %s9, 0
    %p90 = por %p88, %p89
    %p91 = scmp.ne.s32.totalorder %s83, %s85
    %p92 = scmp.eq.s32.totalorder %s14, 1
    %p93 = por %p91, %p92
    %p94 = scmp.ne.s32.totalorder %s85, %s86
    %p95 = scmp.eq.s32.totalorder %s14, 0
    %p96 = por %p94, %p95
    %p97 = scmp.ne.s32.totalorder %s85, %s86
    %p98 = scmp.eq.s32.totalorder %s15, 1
    %p99 = por %p97, %p98
    %p101 = scmp.ne.s32.totalorder %s86, %s100
    %p102 = scmp.eq.s32.totalorder %s15, 0
    %p103 = por %p101, %p102
    %s104 = ssub.s32 %s16, %s28
    %s105 = ssub.s32 %s17, %s24
    %s106 = sor.u32 %s104, %s105
    %p107 = scmp.eq.s32.totalorder %s106, 0
    %s109 = sadd.s32 %s108, 1
    %s110 = scalar_select %p107, %s108, %s109
    %p113 = pneg %p107
    %p114 = scmp.eq.s32.totalorder %s9, 1
    %p115 = por %p113, %p114
    %p116 = scmp.ne.s32.totalorder %s108, %s111
    %p117 = scmp.eq.s32.totalorder %s9, 0
    %p118 = por %p116, %p117
    %p119 = scmp.ne.s32.totalorder %s108, %s111
    %p120 = scmp.eq.s32.totalorder %s14, 1
    %p121 = por %p119, %p120
    %p122 = scmp.ne.s32.totalorder %s111, %s112
    %p123 = scmp.eq.s32.totalorder %s14, 0
    %p124 = por %p122, %p123
    %p125 = scmp.ne.s32.totalorder %s111, %s112
    %p126 = scmp.eq.s32.totalorder %s15, 1
    %p127 = por %p125, %p126
    %p129 = scmp.ne.s32.totalorder %s112, %s128
    %p130 = scmp.eq.s32.totalorder %s15, 0
    %p131 = por %p129, %p130
    %p132 = scmp.le.s32.totalorder 1, %s9
    %p133 = scmp.lt.s32.totalorder %s9, 3
    %p134 = pnand %p132, %p133
    %p135 = pneg %p134
    // Predicated region
    $region9: #{tpu_custom_call.1} parent=5 // pred_check
      _
    $region10: #{tpu_custom_call.1} parent=5 // pred_check_branch
      %137 = sbr.rel (%p134) target = $region12
    $region11: #{tpu_custom_call.1} parent=5 // pred_region
      %s138 = ssub.s32 %s9, 1
      // Predicated region
      $region13: #{tpu_custom_call.1} parent=11 // pred_check
        %p139 = pneg %p96
      $region14: #{tpu_custom_call.1} parent=11 // pred_check_branch
        %141 = sbr.rel (%p139) target = $region16
      $region15: #{tpu_custom_call.1} parent=11 // pred_region
        _
      $region16: #{tpu_custom_call.1} parent=11 // pred_fallthru
        _
    $region12: #{tpu_custom_call.1} parent=5 // pred_fallthru
      _
    %p142 = scmp.lt.s32.totalorder %s9, 2
    // Predicated region
    $region17: #{tpu_custom_call.1} parent=5 // pred_check
      %p143 = pneg %p142
    $region18: #{tpu_custom_call.1} parent=5 // pred_check_branch
      %145 = sbr.rel (%p143) target = $region20
    $region19: #{tpu_custom_call.1} parent=5 // pred_region
      // Predicated region
      $region21: #{tpu_custom_call.1} parent=19 // pred_check
        %p146 = pneg %p43
      $region22: #{tpu_custom_call.1} parent=19 // pred_check_branch
        %148 = sbr.rel (%p146) target = $region24
      $region23: #{tpu_custom_call.1} parent=19 // pred_region
        %p149 = scmp.lt.s32.totalorder %s16, 1
        %s150 = scalar_select %p149, %s16, 1
        %p151 = scmp.lt.s32.totalorder %s17, 0
        %s152 = scalar_select %p151, %s17, 0
        %s153 = sadd.s32 %s152, %s150
        %s154 = smul.addr %s153, 8
        %s155 = scalar_lea.vmem %s0, %s154
      $region24: #{tpu_custom_call.1} parent=19 // pred_fallthru
        _
      // Predicated region
      $region25: #{tpu_custom_call.1} parent=19 // pred_check
        %p156 = pneg %p69
      $region26: #{tpu_custom_call.1} parent=19 // pred_check_branch
        %158 = sbr.rel (%p156) target = $region28
      $region27: #{tpu_custom_call.1} parent=19 // pred_region
        %p159 = scmp.lt.s32.totalorder %s16, 1
        %s160 = scalar_select %p159, %s16, 1
        %s161 = scalar_lea.vmem %s1, %s160
      $region28: #{tpu_custom_call.1} parent=19 // pred_fallthru
        _
    $region20: #{tpu_custom_call.1} parent=5 // pred_fallthru
      _
    %p162 = scmp.le.s32.totalorder 1, %s9
    %p163 = scmp.lt.s32.totalorder %s9, 3
    %p164 = pnand %p162, %p163
    %p165 = pneg %p164
    // Predicated region
    $region29: #{tpu_custom_call.1} parent=5 // pred_check
      _
    $region30: #{tpu_custom_call.1} parent=5 // pred_check_branch
      %167 = sbr.rel (%p164) target = $region32
    $region31: #{tpu_custom_call.1} parent=5 // pred_region
      %s168 = ssub.s32 %s9, 1
      %p169 = scmp.lt.s32.totalorder %s18, 1
      %s170 = scalar_select %p169, %s18, 1
      %p171 = scmp.lt.s32.totalorder %s19, 0
      %s172 = scalar_select %p171, %s19, 0
      %s173 = sadd.s32 %s172, %s170
      %s174 = smul.addr %s173, 8
      %s175 = scalar_lea.vmem %s0, %s174
      %p176 = pneg %p49
      %p177 = pneg %p46
      %p178 = scmp.lt.s32.totalorder %s18, 1
      %s179 = scalar_select %p178, %s18, 1
      %s180 = scalar_lea.vmem %s1, %s179
      %p181 = pneg %p75
      %p182 = pneg %p72
      %p183 = pneg %p96
      %p184 = pneg %p93
      %p185 = pneg %p124
      %p186 = pneg %p121
      %p187 = scmp.lt.s32.totalorder %s18, 1
      %s188 = scalar_select %p187, %s18, 1
      %p189 = scmp.lt.s32.totalorder %s19, 0
      %s190 = scalar_select %p189, %s19, 0
      %s191 = sadd.s32 %s190, %s188
      %s192 = smul.addr %s191, 8
      %s193 = scalar_lea.vmem %s3, %s192
      %p194 = scmp.lt.s32.totalorder %s18, 1
      %s195 = scalar_select %p194, %s18, 1
      %p196 = scmp.lt.s32.totalorder %s19, 0
      %s197 = scalar_select %p196, %s19, 0
      %s198 = sadd.s32 %s197, %s195
      %s199 = smul.addr %s198, 8
      %s200 = scalar_lea.vmem %s0, %s199
      %p201 = scmp.lt.s32.totalorder %s18, 1
      %s202 = scalar_select %p201, %s18, 1
      %s203 = scalar_lea.vmem %s1, %s202
      %p204 = scmp.lt.s32.totalorder %s18, 1
      %s205 = scalar_select %p204, %s18, 1
      %p206 = scmp.lt.s32.totalorder %s19, 0
      %s207 = scalar_select %p206, %s19, 0
      %s208 = sadd.s32 %s207, %s205
      %s209 = smul.addr %s208, 8
      %s210 = scalar_lea.vmem %s3, %s209
      %v211 = vld [vmem:[%s200] sm:$0x7f]
      %v212 = vld [vmem:[%s2] sm:$0xff]
      %v213 = vld [vmem:[%s2 + $0x8] sm:$0xff]
      %v214 = vld [vmem:[%s2 + $0x10] sm:$0xff]
      %v215 = vld [vmem:[%s2 + $0x18] sm:$0xff]
      %v216 = vld [vmem:[%s203] sm:$0x1]
      %v218 = vlaneseq
      %v219 = vshrl.u32 %v218, 7
      %v220 = vsub.s32 0, %v219
      %v221 = vrot.slane %v216, %v220
      %vm223 = vcmask 261120
      %v225 = vsel %vm223, %v211, 0
      %227 = vmatprep.subr.mxu0 0.0
      %228 = vmatpush1.msra.mxu0 %v212
      %229 = vmatprep.subr.mxu0 0.0
      %230 = vmatpush1.msra.mxu0 %v213
      %231 = vmatprep.subr.mxu0 0.0
      %232 = vmatpush1.msra.mxu0 %v214
      %233 = vmatprep.subr.mxu0 0.0
      %234 = vmatpush1.msra.mxu0 %v215
      %235 = vmatprep.subr.mxu0 0.0
      %236 = vmatpush1.msra.mxu0 0.0
      %237 = vmatprep.subr.mxu0 0.0
      %238 = vmatpush1.msra.mxu0 0.0
      %239 = vmatprep.subr.mxu0 0.0
      %240 = vmatpush1.msra.mxu0 0.0
      %241 = vmatprep.subr.mxu0 0.0
      %242 = vmatpush1.msra.mxu0 0.0
      %243 = vmatprep.subr.mxu0 0.0
      %244 = vmatpush1.msra.mxu0 0.0
      %245 = vmatprep.subr.mxu0 0.0
      %246 = vmatpush1.msra.mxu0 0.0
      %247 = vmatprep.subr.mxu0 0.0
      %248 = vmatpush1.msra.mxu0 0.0
      %249 = vmatprep.subr.mxu0 0.0
      %250 = vmatpush1.msra.mxu0 0.0
      %251 = vmatprep.subr.mxu0 0.0
      %252 = vmatpush1.msra.mxu0 0.0
      %253 = vmatprep.subr.mxu0 0.0
      %254 = vmatpush1.msra.mxu0 0.0
      %255 = vmatprep.subr.mxu0 0.0
      %256 = vmatpush1.msra.mxu0 0.0
      %257 = vmatprep.subr.mxu0 0.0
      %258 = vmatpush1.msra.mxu0 0.0
      %259 = vmatprep.subr.mxu0 0.0
      %260 = vmatpush1.msra.mxu0 0.0
      %261 = vmatprep.subr.mxu0 0.0
      %262 = vmatpush1.msra.mxu0 0.0
      %263 = vmatprep.subr.mxu0 0.0
      %264 = vmatpush1.msra.mxu0 0.0
      %265 = vmatprep.subr.mxu0 0.0
      %266 = vmatpush1.msra.mxu0 0.0
      %267 = vmatprep.subr.mxu0 0.0
      %268 = vmatpush1.msra.mxu0 0.0
      %269 = vmatprep.subr.mxu0 0.0
      %270 = vmatpush1.msra.mxu0 0.0
      %271 = vmatprep.subr.mxu0 0.0
      %272 = vmatpush1.msra.mxu0 0.0
      %273 = vmatprep.subr.mxu0 0.0
      %274 = vmatpush1.msra.mxu0 0.0
      %275 = vmatprep.subr.mxu0 0.0
      %276 = vmatpush1.msra.mxu0 0.0
      %277 = vmatprep.subr.mxu0 0.0
      %278 = vmatpush1.msra.mxu0 0.0
      %279 = vmatprep.subr.mxu0 0.0
      %280 = vmatpush1.msra.mxu0 0.0
      %281 = vmatprep.subr.mxu0 0.0
      %282 = vmatpush1.msra.mxu0 0.0
      %283 = vmatprep.subr.mxu0 0.0
      %284 = vmatpush1.msra.mxu0 0.0
      %285 = vmatprep.subr.mxu0 0.0
      %286 = vmatpush1.msra.mxu0 0.0
      %287 = vmatprep.subr.mxu0 0.0
      %288 = vmatpush1.msra.mxu0 0.0
      %289 = vmatprep.subr.mxu0 0.0
      %290 = vmatpush1.msra.mxu0 0.0
      %291 = vmatprep.mubr.f32.mxu0 0.0
      %292 = vmatmul.mubr.f32.gmra.mrb[0].mxu0 %v225
      %v293 = vpop.f32.mrb[0].mxu0
      %v294 = vadd.f32 %v221, %v293
      %v295 = vpop.f32.mrb[0].mxu0
      %296 = vdwg.mxu0
      %vm297 = vcmask 14336
      %298 = vst.msk [vmem:[%s210] sm:$0x7f] %vm297, %v294
      %p299 = scmp.lt.s32.totalorder %s18, 1
      %s300 = scalar_select %p299, %s18, 1
      %p301 = scmp.lt.s32.totalorder %s19, 0
      %s302 = scalar_select %p301, %s19, 0
      %s303 = sadd.s32 %s302, %s300
      %s304 = smul.addr %s303, 8
      %s305 = scalar_lea.vmem %s3, %s304
      // Predicated region
      $region33: #{tpu_custom_call.1} parent=31 // pred_check
        %p306 = pneg %p121
      $region34: #{tpu_custom_call.1} parent=31 // pred_check_branch
        %308 = sbr.rel (%p306) target = $region36
      $region35: #{tpu_custom_call.1} parent=31 // pred_region
        _
      $region36: #{tpu_custom_call.1} parent=31 // pred_fallthru
        _
    $region32: #{tpu_custom_call.1} parent=5 // pred_fallthru
      _
    %p309 = scmp.le.s32.totalorder 2, %s9
    // Predicated region
    $region37: #{tpu_custom_call.1} parent=5 // pred_check
      %p310 = pneg %p309
    $region38: #{tpu_custom_call.1} parent=5 // pred_check_branch
      %312 = sbr.rel (%p310) target = $region40
    $region39: #{tpu_custom_call.1} parent=5 // pred_region
      %s313 = ssub.s32 %s9, 2
      // Predicated region
      $region41: #{tpu_custom_call.1} parent=39 // pred_check
        %p314 = pneg %p127
      $region42: #{tpu_custom_call.1} parent=39 // pred_check_branch
        %316 = sbr.rel (%p314) target = $region44
      $region43: #{tpu_custom_call.1} parent=39 // pred_region
        %p317 = scmp.lt.s32.totalorder %s20, 1
        %s318 = scalar_select %p317, %s20, 1
        %p319 = scmp.lt.s32.totalorder %s21, 0
        %s320 = scalar_select %p319, %s21, 0
        %s321 = sadd.s32 %s320, %s318
        %s322 = smul.addr %s321, 8
        %s323 = scalar_lea.vmem %s3, %s322
      $region44: #{tpu_custom_call.1} parent=39 // pred_fallthru
        _
    $region40: #{tpu_custom_call.1} parent=5 // pred_fallthru
      _
  $region6: #{tpu_custom_call.1} parent=0 // loop_footer
    %s13 = sadd.s32 1, %s9
  $region7: #{tpu_custom_call.1} parent=0 // loop_footer_branch
    %8 = sbr.rel target = $region3
  $region8: #{tpu_custom_call.1} parent=0 // loop_exit
    _

</llo_original>
